<compile_context>
chip_gen: v7x
topology: tpu7x:2x2x1
jax: 0.10.0
libtpu: 0.0.40
codegen_flags: <defaults>
</compile_context>

<pallas_src>
import numpy as np
import jax
import jax.numpy as jnp
from jax.experimental import pallas as pl
from jax.experimental.pallas import tpu as pltpu


def _round_up(x, m):
    return (x + m - 1) // m * m


def _pad_to(a, axis, size):
    """Zero-pad `a` along `axis` up to `size` (exact-result padding)."""
    pad = size - a.shape[axis]
    if pad == 0:
        return a
    widths = [(0, 0)] * a.ndim
    widths[axis] = (0, pad)
    return jnp.pad(a, widths)


# ----------------------------------------------------------------------------
# Pallas kernel: AdaptivePoolCompressor hot path.
# Grid = (batch blocks  [parallel], L tiles [arbitrary / reduction]).
#   acc[b]  += P_tile @ X[b]_tile        (adaptive avg pool, bf16 operands, f32 acc)
#   (last L tile only)
#   h        = relu(flat @ W1 + b1)      (flat = [(block_b*Tp), Dp], bias/ReLU in f32)
#   out      = h @ W2 + b2
# ----------------------------------------------------------------------------
def _compressor_kernel(p_ref, x_ref, w1_ref, b1_ref, w2_ref, b2_ref, o_ref, acc_ref):
    k = pl.program_id(1)
    bblk, tp, dp = acc_ref.shape

    @pl.when(k == 0)
    def _init():
        acc_ref[...] = jnp.zeros_like(acc_ref)

    # Pooling partial sum for this L tile.  X is loaded as f32 by the pipeline and cast
    # to bf16 here (no extra wrapper-side HBM pass).  Per-batch 2-D dots keep the MXU on
    # canonical [Tp,Lt]@[Lt,Dp] tiles instead of a broadcasted batched dot_general.
    p = p_ref[...]                                            # [Tp, Lt] bf16
    for b in range(bblk):                                     # bblk is a static constant
        xb = x_ref[b].astype(jnp.bfloat16)                    # [Lt, Dp]
        acc_ref[b] = acc_ref[b] + jnp.dot(
            p, xb, preferred_element_type=jnp.float32)        # f32 accumulate

    @pl.when(k == pl.num_programs(1) - 1)
    def _finalize():
        # Flatten (batch block, target_len) into the matmul M dimension.
        flat = acc_ref[...].reshape(bblk * tp, dp)            # f32
        h = jnp.dot(flat.astype(jnp.bfloat16), w1_ref[...],
                    preferred_element_type=jnp.float32)
        h = jnp.maximum(h + b1_ref[...], 0.0)                 # bias + ReLU in f32 (VPU)
        out = jnp.dot(h.astype(jnp.bfloat16), w2_ref[...],
                      preferred_element_type=jnp.float32)
        out = out + b2_ref[...]
        # Lane-dense store (Dp multiple of 128 -> unmasked vst).
        o_ref[...] = out.reshape(bblk, tp, dp).astype(o_ref.dtype)


def adaptive_pool_compressor(padded_batch, pool_matrix, w1, b1, w2, b2,
                             block_b=None, lt=256):
    """padded_batch: [B, L, D] f32 -> (compressed [B, T, D] f32, mask [B, T] f32)."""
    B, L, D = padded_batch.shape
    T = pool_matrix.shape[0]

    # >= 2 parallel batch steps whenever B >= 2 (shards across v7x's two TensorCores).
    if block_b is None:
        block_b = max(1, B // 2)
    assert B % block_b == 0

    # Lane/sublane/MXU-friendly padded sizes.  Zero padding is exact: padded pool
    # rows/columns and padded feature columns are zero or sliced off.
    Dp = _round_up(D, 128)                 # lane-dense loads + unmasked output stores
    Tp = _round_up(T, 8)                   # sublane-aligned accumulator / flatten no-op
    lt = min(lt, _round_up(L, 128))        # L tile, multiple of 128 (MXU K tile)
    Lp = _round_up(L, lt)                  # padded L, multiple of the tile
    n_l = Lp // lt

    # X stays f32 and is cast in-kernel; small operands (P, W) are pre-cast to bf16,
    # biases stay f32 (added after the f32-accumulated matmul).
    x = _pad_to(_pad_to(padded_batch, 1, Lp), 2, Dp)                 # [B, Lp, Dp] f32
    p = _pad_to(_pad_to(pool_matrix, 0, Tp), 1, Lp).astype(jnp.bfloat16)   # [Tp, Lp]
    w1p = _pad_to(_pad_to(w1, 0, Dp), 1, Dp).astype(jnp.bfloat16)          # [Dp, Dp]
    w2p = _pad_to(_pad_to(w2, 0, Dp), 1, Dp).astype(jnp.bfloat16)          # [Dp, Dp]
    b1p = _pad_to(b1, 1, Dp).astype(jnp.float32)                           # [1, Dp]
    b2p = _pad_to(b2, 1, Dp).astype(jnp.float32)                           # [1, Dp]

    flops = 2 * B * Tp * Lp * Dp + 2 * 2 * (B * Tp) * Dp * Dp
    bytes_accessed = (B * Lp * Dp * 4                      # X f32 stream
                      + (B // block_b) * Tp * Lp * 2       # P per batch block
                      + 2 * Dp * Dp * 2 + 2 * Dp * 4       # weights + biases
                      + B * Tp * Dp * 4)                    # output

    out_padded = pl.pallas_call(
        _compressor_kernel,
        out_shape=jax.ShapeDtypeStruct((B, Tp, Dp), jnp.float32),
        grid_spec=pltpu.PrefetchScalarGridSpec(
            num_scalar_prefetch=0,
            grid=(B // block_b, n_l),
            in_specs=[
                pl.BlockSpec((Tp, lt), lambda i, k: (0, k)),             # pool matrix
                pl.BlockSpec((block_b, lt, Dp), lambda i, k: (i, k, 0)),  # X (f32)
                pl.BlockSpec((Dp, Dp), lambda i, k: (0, 0)),             # W1 (resident)
                pl.BlockSpec((1, Dp), lambda i, k: (0, 0)),              # b1 (resident)
                pl.BlockSpec((Dp, Dp), lambda i, k: (0, 0)),             # W2 (resident)
                pl.BlockSpec((1, Dp), lambda i, k: (0, 0)),              # b2 (resident)
            ],
            out_specs=pl.BlockSpec((block_b, Tp, Dp), lambda i, k: (i, 0, 0)),
            scratch_shapes=[pltpu.VMEM((block_b, Tp, Dp), jnp.float32)],  # pooled acc
        ),
        compiler_params=pltpu.CompilerParams(
            dimension_semantics=("parallel", "arbitrary"),
            vmem_limit_bytes=48 * 1024 * 1024),
        cost_estimate=pl.CostEstimate(
            flops=int(flops), transcendentals=0,
            bytes_accessed=int(bytes_accessed)),
    )(p, x, w1p, b1p, w2p, b2p)

    compressed = out_padded[:, :T, :D]
    # Attention mask of the compressor output is all-ones (matches torch.ones).
    attention_mask = jnp.ones((B, T), dtype=jnp.float32)
    return compressed, attention_mask


# ----------------------------------------------------------------------------
# Glue that reproduces the chunking / padding / concat semantics of forward().
# TODO(synk): tokenizer + pretrained T5EncoderModel are external (string ops +
# checkpoint weights) and are replaced by a deterministic embedding-table lookup.
# ----------------------------------------------------------------------------
def adaptive_avg_pool_matrix(L, T):
    """P[i, j] implementing torch.nn.AdaptiveAvgPool1d(T) over length L exactly."""
    P = np.zeros((T, L), dtype=np.float32)
    for i in range(T):
        s = (i * L) // T
        e = -((-(i + 1) * L) // T)  # ceil((i+1)*L / T)
        P[i, s:e] = 1.0 / float(e - s)
    return jnp.asarray(P)


def synthetic_chunk_encode(token_ids, chunk_size, stride, pad_token_id, embed_table):
    """Mimics: chunk -> pad chunks to longest -> 'encode' -> flatten-concat."""
    chunks = [token_ids[i:i + chunk_size] for i in range(0, len(token_ids), stride)]
    if not chunks:
        chunks = [[pad_token_id]]
    longest = max(len(c) for c in chunks)
    padded = np.full((len(chunks), longest), pad_token_id, dtype=np.int32)
    for r, c in enumerate(chunks):
        padded[r, :len(c)] = c
    # synthetic deterministic "encoder": embedding lookup (stands in for T5 last_hidden_state)
    emb = embed_table[padded.reshape(-1)]            # [n_chunks * longest, D]
    return emb


if __name__ == "__main__":
    # Small, deterministic configuration (real T5 d_models 512/768/1024 are all
    # multiples of 128; 128 is the smallest lane-aligned stand-in).
    d_model = 128         # encoder.config.d_model
    target_len = 16       # compressor target length
    chunk_size = 8
    stride = 4
    pad_token_id = 0
    vocab = 50

    key = jax.random.PRNGKey(0)
    k_emb, k_tok0, k_tok1, k_w1, k_b1, k_w2, k_b2 = jax.random.split(key, 7)

    embed_table = np.asarray(
        jax.random.normal(k_emb, (vocab, d_model), dtype=jnp.float32) * 0.1)

    # Two "documents" of different token lengths (long enough that the padded sequence
    # spans several L tiles, exercising the reduction grid axis + accumulator).
    tok0 = np.asarray(jax.random.randint(k_tok0, (100,), 1, vocab)).tolist()
    tok1 = np.asarray(jax.random.randint(k_tok1, (150,), 1, vocab)).tolist()

    batch_embeddings = [
        synthetic_chunk_encode(tok0, chunk_size, stride, pad_token_id, embed_table),
        synthetic_chunk_encode(tok1, chunk_size, stride, pad_token_id, embed_table),
    ]
    max_len = max(e.shape[0] for e in batch_embeddings)
    padded_batch = np.stack([
        np.pad(e, ((0, max_len - e.shape[0]), (0, 0))) for e in batch_embeddings
    ]).astype(np.float32)                                   # [B, L, D]
    padded_batch = jnp.asarray(padded_batch)

    # AdaptivePoolCompressor parameters (Linear(D,D) -> ReLU -> Linear(D,D)).
    w1 = jax.random.normal(k_w1, (d_model, d_model), dtype=jnp.float32) * 0.05
    b1 = jax.random.normal(k_b1, (1, d_model), dtype=jnp.float32) * 0.01
    w2 = jax.random.normal(k_w2, (d_model, d_model), dtype=jnp.float32) * 0.05
    b2 = jax.random.normal(k_b2, (1, d_model), dtype=jnp.float32) * 0.01

    pool_matrix = adaptive_avg_pool_matrix(max_len, target_len)   # [T, L]

    compressed, attn_mask = adaptive_pool_compressor(
        padded_batch, pool_matrix, w1, b1, w2, b2, block_b=1, lt=128)
    jax.block_until_ready((compressed, attn_mask))

    # Pure-JAX reference using the same precision path (bf16 matmul operands, f32 acc).
    xb = padded_batch.astype(jnp.bfloat16)
    pb = pool_matrix.astype(jnp.bfloat16)
    w1b = w1.astype(jnp.bfloat16)
    w2b = w2.astype(jnp.bfloat16)
    pooled_ref = jnp.einsum("tl,bld->btd", pb, xb, preferred_element_type=jnp.float32)
    h_ref = jnp.maximum(
        jnp.einsum("btd,de->bte", pooled_ref.astype(jnp.bfloat16), w1b,
                   preferred_element_type=jnp.float32) + b1[0], 0.0)
    out_ref = jnp.einsum("btd,de->bte", h_ref.astype(jnp.bfloat16), w2b,
                         preferred_element_type=jnp.float32) + b2[0]
    np.testing.assert_allclose(np.asarray(compressed), np.asarray(out_ref),
                               rtol=2e-2, atol=2e-2)
    assert compressed.shape == (2, target_len, d_model)
    assert attn_mask.shape == (2, target_len)

    print("KERNEL_OK")
</pallas_src>

<mosaic_0001>
module attributes {stable_mosaic.version = 11 : i64} {
  func.func @_compressor_kernel(%arg0: i32, %arg1: i32, %arg2: memref<16x128xbf16, #tpu.memory_space<vmem>>, %arg3: memref<1x128x128xf32, #tpu.memory_space<vmem>>, %arg4: memref<128x128xbf16, #tpu.memory_space<vmem>>, %arg5: memref<1x128xf32, #tpu.memory_space<vmem>>, %arg6: memref<128x128xbf16, #tpu.memory_space<vmem>>, %arg7: memref<1x128xf32, #tpu.memory_space<vmem>>, %arg8: memref<1x16x128xf32, #tpu.memory_space<vmem>>, %arg9: memref<1x16x128xf32, #tpu.memory_space<vmem>>) attributes {dimension_semantics = [#tpu.dimension_semantics<parallel>, #tpu.dimension_semantics<arbitrary>], iteration_bounds = array<i64: 2, 3>, scalar_prefetch = 0 : i64, scratch_operands = 1 : i64, tpu.core_type = #tpu.core_type<tc>, window_params = [{transform_indices = @transform_0, window_bounds = array<i64: 16, 128>}, {transform_indices = @transform_1, window_bounds = array<i64: 1, 128, 128>}, {pipeline_mode = #tpu.pipeline_mode<synchronous>, transform_indices = @transform_2, window_bounds = array<i64: 128, 128>}, {pipeline_mode = #tpu.pipeline_mode<synchronous>, transform_indices = @transform_3, window_bounds = array<i64: 1, 128>}, {pipeline_mode = #tpu.pipeline_mode<synchronous>, transform_indices = @transform_4, window_bounds = array<i64: 128, 128>}, {pipeline_mode = #tpu.pipeline_mode<synchronous>, transform_indices = @transform_5, window_bounds = array<i64: 1, 128>}, {transform_indices = @transform_6, window_bounds = array<i64: 1, 16, 128>}]} {
    %c0_i32 = arith.constant 0 : i32
    %0 = arith.cmpi eq, %arg1, %c0_i32 : i32
    %1 = arith.extui %0 : i1 to i32
    %c0_i32_0 = arith.constant 0 : i32
    %2 = arith.cmpi ne, %1, %c0_i32_0 : i32
    scf.if %2 {
      %cst_12 = arith.constant 0.000000e+00 : f32
      %17 = vector.broadcast %cst_12 : f32 to vector<1x16x128xf32>
      %c0_13 = arith.constant 0 : index
      %c0_14 = arith.constant 0 : index
      %c0_15 = arith.constant 0 : index
      %18 = vector.load %arg9[%c0_13, %c0_14, %c0_15] : memref<1x16x128xf32, #tpu.memory_space<vmem>>, vector<1x16x128xf32>
      tpu.vector_store %arg9[%c0_13, %c0_14, %c0_15], %17 {strides = array<i32>} : memref<1x16x128xf32, #tpu.memory_space<vmem>>, vector<1x16x128xf32>,
    } else {
    }
    %c0 = arith.constant 0 : index
    %c0_1 = arith.constant 0 : index
    %3 = vector.load %arg2[%c0, %c0_1] : memref<16x128xbf16, #tpu.memory_space<vmem>>, vector<16x128xbf16>
    %c0_2 = arith.constant 0 : index
    %c0_3 = arith.constant 0 : index
    %c0_4 = arith.constant 0 : index
    %4 = vector.load %arg3[%c0_2, %c0_3, %c0_4] : memref<1x128x128xf32, #tpu.memory_space<vmem>>, vector<1x128x128xf32>
    %5 = vector.shape_cast %4 : vector<1x128x128xf32> to vector<128x128xf32>
    %6 = arith.truncf %5 : vector<128x128xf32> to vector<128x128xbf16>
    %c0_5 = arith.constant 0 : index
    %c0_6 = arith.constant 0 : index
    %c0_7 = arith.constant 0 : index
    %7 = vector.load %arg9[%c0_5, %c0_6, %c0_7] : memref<1x16x128xf32, #tpu.memory_space<vmem>>, vector<1x16x128xf32>
    %8 = vector.shape_cast %7 : vector<1x16x128xf32> to vector<16x128xf32>
    %cst = arith.constant dense<0.000000e+00> : vector<16x128xf32>
    %9 = tpu.matmul %3, %6, %cst {dimension_numbers = #tpu.dot_dimension_numbers<[1], [0], [0], [1], [0, 0, 1, 1], [], []>} : vector<16x128xbf16>, vector<128x128xbf16>, vector<16x128xf32> -> vector<16x128xf32>
    %10 = arith.addf %8, %9 : vector<16x128xf32>
    %c0_8 = arith.constant 0 : index
    %c0_9 = arith.constant 0 : index
    %c0_10 = arith.constant 0 : index
    %11 = vector.load %arg9[%c0_8, %c0_9, %c0_10] : memref<1x16x128xf32, #tpu.memory_space<vmem>>, vector<1x16x128xf32>
    %12 = vector.shape_cast %11 : vector<1x16x128xf32> to vector<16x128xf32>
    %13 = vector.shape_cast %10 : vector<16x128xf32> to vector<1x16x128xf32>
    tpu.vector_store %arg9[%c0_8, %c0_9, %c0_10], %13 {strides = array<i32>} : memref<1x16x128xf32, #tpu.memory_space<vmem>>, vector<1x16x128xf32>,
    %c2_i32 = arith.constant 2 : i32
    %14 = arith.cmpi eq, %arg1, %c2_i32 : i32
    %15 = arith.extui %14 : i1 to i32
    %c0_i32_11 = arith.constant 0 : i32
    %16 = arith.cmpi ne, %15, %c0_i32_11 : i32
    scf.if %16 {
      %c0_12 = arith.constant 0 : index
      %c0_13 = arith.constant 0 : index
      %c0_14 = arith.constant 0 : index
      %17 = vector.load %arg9[%c0_12, %c0_13, %c0_14] : memref<1x16x128xf32, #tpu.memory_space<vmem>>, vector<1x16x128xf32>
      %18 = vector.shape_cast %17 : vector<1x16x128xf32> to vector<16x128xf32>
      %19 = arith.truncf %18 : vector<16x128xf32> to vector<16x128xbf16>
      %c0_15 = arith.constant 0 : index
      %c0_16 = arith.constant 0 : index
      %20 = vector.load %arg4[%c0_15, %c0_16] : memref<128x128xbf16, #tpu.memory_space<vmem>>, vector<128x128xbf16>
      %cst_17 = arith.constant dense<0.000000e+00> : vector<16x128xf32>
      %21 = tpu.matmul %19, %20, %cst_17 {dimension_numbers = #tpu.dot_dimension_numbers<[1], [0], [0], [1], [0, 0, 1, 1], [], []>} : vector<16x128xbf16>, vector<128x128xbf16>, vector<16x128xf32> -> vector<16x128xf32>
      %c0_18 = arith.constant 0 : index
      %c0_19 = arith.constant 0 : index
      %22 = vector.load %arg5[%c0_18, %c0_19] : memref<1x128xf32, #tpu.memory_space<vmem>>, vector<1x128xf32>
      %23 = vector.broadcast %22 : vector<1x128xf32> to vector<16x128xf32>
      %24 = arith.addf %21, %23 : vector<16x128xf32>
      %cst_20 = arith.constant 0.000000e+00 : f32
      %25 = vector.broadcast %cst_20 : f32 to vector<16x128xf32>
      %26 = arith.maximumf %24, %25 : vector<16x128xf32>
      %27 = arith.truncf %26 : vector<16x128xf32> to vector<16x128xbf16>
      %c0_21 = arith.constant 0 : index
      %c0_22 = arith.constant 0 : index
      %28 = vector.load %arg6[%c0_21, %c0_22] : memref<128x128xbf16, #tpu.memory_space<vmem>>, vector<128x128xbf16>
      %cst_23 = arith.constant dense<0.000000e+00> : vector<16x128xf32>
      %29 = tpu.matmul %27, %28, %cst_23 {dimension_numbers = #tpu.dot_dimension_numbers<[1], [0], [0], [1], [0, 0, 1, 1], [], []>} : vector<16x128xbf16>, vector<128x128xbf16>, vector<16x128xf32> -> vector<16x128xf32>
      %c0_24 = arith.constant 0 : index
      %c0_25 = arith.constant 0 : index
      %30 = vector.load %arg7[%c0_24, %c0_25] : memref<1x128xf32, #tpu.memory_space<vmem>>, vector<1x128xf32>
      %31 = vector.broadcast %30 : vector<1x128xf32> to vector<16x128xf32>
      %32 = arith.addf %29, %31 : vector<16x128xf32>
      %33 = vector.shape_cast %32 : vector<16x128xf32> to vector<1x16x128xf32>
      %c0_26 = arith.constant 0 : index
      %c0_27 = arith.constant 0 : index
      %c0_28 = arith.constant 0 : index
      %34 = vector.load %arg8[%c0_26, %c0_27, %c0_28] : memref<1x16x128xf32, #tpu.memory_space<vmem>>, vector<1x16x128xf32>
      tpu.vector_store %arg8[%c0_26, %c0_27, %c0_28], %33 {strides = array<i32>} : memref<1x16x128xf32, #tpu.memory_space<vmem>>, vector<1x16x128xf32>,
    } else {
    }
    return
  }
  func.func @transform_0(%arg0: i32, %arg1: i32) -> (i32, i32) {
    %c0_i32 = arith.constant 0 : i32
    %c0_i32_0 = arith.constant 0 : i32
    return %c0_i32, %arg1 : i32, i32
  }
  func.func @transform_1(%arg0: i32, %arg1: i32) -> (i32, i32, i32) {
    %c0_i32 = arith.constant 0 : i32
    %c0_i32_0 = arith.constant 0 : i32
    return %arg0, %arg1, %c0_i32 : i32, i32, i32
  }
  func.func @transform_2(%arg0: i32, %arg1: i32) -> (i32, i32) {
    %c0_i32 = arith.constant 0 : i32
    %c0_i32_0 = arith.constant 0 : i32
    %c0_i32_1 = arith.constant 0 : i32
    return %c0_i32, %c0_i32_0 : i32, i32
  }
  func.func @transform_3(%arg0: i32, %arg1: i32) -> (i32, i32) {
    %c0_i32 = arith.constant 0 : i32
    %c0_i32_0 = arith.constant 0 : i32
    %c0_i32_1 = arith.constant 0 : i32
    return %c0_i32, %c0_i32_0 : i32, i32
  }
  func.func @transform_4(%arg0: i32, %arg1: i32) -> (i32, i32) {
    %c0_i32 = arith.constant 0 : i32
    %c0_i32_0 = arith.constant 0 : i32
    %c0_i32_1 = arith.constant 0 : i32
    return %c0_i32, %c0_i32_0 : i32, i32
  }
  func.func @transform_5(%arg0: i32, %arg1: i32) -> (i32, i32) {
    %c0_i32 = arith.constant 0 : i32
    %c0_i32_0 = arith.constant 0 : i32
    %c0_i32_1 = arith.constant 0 : i32
    return %c0_i32, %c0_i32_0 : i32, i32
  }
  func.func @transform_6(%arg0: i32, %arg1: i32) -> (i32, i32, i32) {
    %c0_i32 = arith.constant 0 : i32
    %c0_i32_0 = arith.constant 0 : i32
    %c0_i32_1 = arith.constant 0 : i32
    return %arg0, %c0_i32, %c0_i32_0 : i32, i32, i32
  }
}

</mosaic_0001>

<llo_original>
// kernel: tpu_custom_call.1
$region0: #{tpu_custom_call.1}
  #allocation0 [shape = 'u32[]', space=smem, size = 0x4, offset = 0x4, fixed_abs, tag = 'smem constant byte address 0x4 - core index']
  #allocation1 [shape = 'u32[144,128]{1,0:T(1,128)}', space=vmem, size = 0x12000, scoped, tag = 'internal scratch']
  #allocation2 [shape = 'f32[1,16,128]{2,1,0:T(8,128)}', space=vmem, size = 0x2000, scoped, tag = 'scratch operand']
  %s0 = inlined_call_operand.hbm [shape: bf16[16,384], index: 0, kind: input, shape index: {}]
  %s1 = inlined_call_operand.hbm [shape: f32[2,384,128], index: 1, kind: input, shape index: {}]
  %s2 = inlined_call_operand.hbm [shape: bf16[128,128], index: 2, kind: input, shape index: {}]
  %s3 = inlined_call_operand.vmem [shape: f32[1,128], index: 3, kind: input, shape index: {}]
  %s4 = inlined_call_operand.hbm [shape: bf16[128,128], index: 4, kind: input, shape index: {}]
  %s5 = inlined_call_operand.vmem [shape: f32[1,128], index: 5, kind: input, shape index: {}]
  %s6 = inlined_call_operand.hbm [shape: f32[2,16,128], index: 6, kind: output, shape index: {}]
  %s7 = sld [smem:[#allocation0]]
  $region81: #{tpu_custom_call.1} parent=0
    _
  %s9 = ssub.s32 1, %s7
  %s10 = scalar_select 0, %s9, %s7
  $region1: #{tpu_custom_call.1} parent=0
    #allocation3 [shape = 'u8[8192]{0}', space=vmem, size = 0x2000, scoped, tag = 'input window, operand 0']
    #allocation4 [shape = 's32[2]{0}', space=sflag, size = 0x8, scoped, tag = 'scoped memory for tpu_custom_call.1']
    #allocation5 [shape = 's32[2]{0}', space=sflag, size = 0x8, scoped, tag = 'scoped memory for tpu_custom_call.1']
    #allocation6 [shape = 'u8[131072]{0}', space=vmem, size = 0x20000, scoped, tag = 'input window, operand 1']
    #allocation7 [shape = 's32[2]{0}', space=sflag, size = 0x8, scoped, tag = 'scoped memory for tpu_custom_call.1']
    #allocation8 [shape = 'u8[32768]{0}', space=vmem, size = 0x8000, scoped, tag = 'input window, operand 2, single buffered']
    #allocation9 [shape = 'u8[32768]{0}', space=vmem, size = 0x8000, scoped, tag = 'input window, operand 4, single buffered']
    #allocation10 [shape = 's32[1]{0}', space=sflag, size = 0x4, scoped, tag = 'scoped memory for tpu_custom_call.1']
    #allocation11 [shape = 'u8[16384]{0}', space=vmem, size = 0x4000, scoped, tag = 'output window, operand 0']
    %11 = vsyncpa [#allocation4], 0
    %s12 = scalar_lea.sflag [#allocation4], 1
    %13 = vsyncpa %s12, 0
    %14 = vsyncpa [#allocation7], 0
    %s15 = scalar_lea.sflag [#allocation7], 1
    %16 = vsyncpa %s15, 0
    %17 = vsyncpa [#allocation10], 0
    %18 = vsyncpa [#allocation5], 0
    %s19 = scalar_lea.sflag [#allocation5], 1
    %20 = vsyncpa %s19, 0
    loop: start=0, step=1, limit=8
    $region2: #{tpu_custom_call.1} parent=1 // loop_pre_header
      _
    $region3: #{tpu_custom_call.1} parent=1 // loop_header
      %s22 = sphi 0, %s26
      %p23 = scmp.ge.s32.totalorder %s22, 8
      %s29 = sphi 0, %s41
      %s30 = sphi 0, %s37
      %s31 = sphi 0, %s29
      %s32 = sphi 0, %s30
      %s33 = sphi 0, %s31
      %s34 = sphi 0, %s32
      %s44 = sphi 0, %s46
      %s47 = sphi 0, %s44
      %s48 = sphi 0, %s47
      %s64 = sphi 0, %s48
      %s72 = sphi 0, %s74
      %s75 = sphi 0, %s72
      %s76 = sphi 0, %s75
      %s92 = sphi 0, %s76
      %s96 = sphi 0, %s96
      %s98 = sphi 0, %s96
      %s99 = sphi 0, %s98
      %s113 = sphi 0, %s99
      %s117 = sphi 0, %s117
      %s119 = sphi 0, %s117
      %s120 = sphi 0, %s119
      %s134 = sphi 0, %s120
      %s138 = sphi 0, %s138
      %s140 = sphi 0, %s138
      %s141 = sphi 0, %s140
      %s155 = sphi 0, %s141
      %s159 = sphi 0, %s159
      %s161 = sphi 0, %s159
      %s162 = sphi 0, %s161
      %s176 = sphi 0, %s162
      %s182 = sphi 0, %s184
      %s185 = sphi 0, %s182
      %s186 = sphi 0, %s185
      %s202 = sphi 0, %s186
    $region4: #{tpu_custom_call.1} parent=1 // loop_header_branch
      %25 = sbr.rel (%p23) target = $region8
    $region5: #{tpu_custom_call.1} parent=1 // loop_body
      %s27 = ssub.s32 %s22, 1
      %s28 = ssub.s32 %s22, 2
      %s35 = sadd.s32 1, %s30
      %p36 = scmp.ge.s32.totalorder %s35, 3
      %s37 = scalar_select %p36, 0, %s35
      %s38 = sadd.s32 1, %s29
      %s39 = scalar_select %p36, %s38, %s29
      %p40 = scmp.ge.s32.totalorder %s39, 2
      %s41 = scalar_select %p40, 0, %s39
      %s42 = ssub.s32 %s30, %s37
      %p43 = scmp.eq.s32.totalorder %s42, 0
      %s45 = sadd.s32 %s44, 1
      %s46 = scalar_select %p43, %s44, %s45
      %p49 = pneg %p43
      %p50 = scmp.eq.s32.totalorder %s22, 5
      %p51 = por %p49, %p50
      %p52 = scmp.ne.s32.totalorder %s44, %s47
      %p53 = scmp.eq.s32.totalorder %s22, 0
      %p54 = por %p52, %p53
      %p55 = scmp.ne.s32.totalorder %s44, %s47
      %p56 = scmp.eq.s32.totalorder %s27, 5
      %p57 = por %p55, %p56
      %p58 = scmp.ne.s32.totalorder %s47, %s48
      %p59 = scmp.eq.s32.totalorder %s27, 0
      %p60 = por %p58, %p59
      %p61 = scmp.ne.s32.totalorder %s47, %s48
      %p62 = scmp.eq.s32.totalorder %s28, 5
      %p63 = por %p61, %p62
      %p65 = scmp.ne.s32.totalorder %s48, %s64
      %p66 = scmp.eq.s32.totalorder %s28, 0
      %p67 = por %p65, %p66
      %s68 = ssub.s32 %s29, %s41
      %s69 = ssub.s32 %s30, %s37
      %s70 = sor.u32 %s68, %s69
      %p71 = scmp.eq.s32.totalorder %s70, 0
      %s73 = sadd.s32 %s72, 1
      %s74 = scalar_select %p71, %s72, %s73
      %p77 = pneg %p71
      %p78 = scmp.eq.s32.totalorder %s22, 5
      %p79 = por %p77, %p78
      %p80 = scmp.ne.s32.totalorder %s72, %s75
      %p81 = scmp.eq.s32.totalorder %s22, 0
      %p82 = por %p80, %p81
      %p83 = scmp.ne.s32.totalorder %s72, %s75
      %p84 = scmp.eq.s32.totalorder %s27, 5
      %p85 = por %p83, %p84
      %p86 = scmp.ne.s32.totalorder %s75, %s76
      %p87 = scmp.eq.s32.totalorder %s27, 0
      %p88 = por %p86, %p87
      %p89 = scmp.ne.s32.totalorder %s75, %s76
      %p90 = scmp.eq.s32.totalorder %s28, 5
      %p91 = por %p89, %p90
      %p93 = scmp.ne.s32.totalorder %s76, %s92
      %p94 = scmp.eq.s32.totalorder %s28, 0
      %p95 = por %p93, %p94
      %s97 = sadd.s32 %s96, 1
      %p100 = scmp.eq.s32.totalorder %s22, 5
      %p101 = scmp.ne.s32.totalorder %s96, %s98
      %p102 = scmp.eq.s32.totalorder %s22, 0
      %p103 = por %p101, %p102
      %p104 = scmp.ne.s32.totalorder %s96, %s98
      %p105 = scmp.eq.s32.totalorder %s27, 5
      %p106 = por %p104, %p105
      %p107 = scmp.ne.s32.totalorder %s98, %s99
      %p108 = scmp.eq.s32.totalorder %s27, 0
      %p109 = por %p107, %p108
      %p110 = scmp.ne.s32.totalorder %s98, %s99
      %p111 = scmp.eq.s32.totalorder %s28, 5
      %p112 = por %p110, %p111
      %p114 = scmp.ne.s32.totalorder %s99, %s113
      %p115 = scmp.eq.s32.totalorder %s28, 0
      %p116 = por %p114, %p115
      %s118 = sadd.s32 %s117, 1
      %p121 = scmp.eq.s32.totalorder %s22, 5
      %p122 = scmp.ne.s32.totalorder %s117, %s119
      %p123 = scmp.eq.s32.totalorder %s22, 0
      %p124 = por %p122, %p123
      %p125 = scmp.ne.s32.totalorder %s117, %s119
      %p126 = scmp.eq.s32.totalorder %s27, 5
      %p127 = por %p125, %p126
      %p128 = scmp.ne.s32.totalorder %s119, %s120
      %p129 = scmp.eq.s32.totalorder %s27, 0
      %p130 = por %p128, %p129
      %p131 = scmp.ne.s32.totalorder %s119, %s120
      %p132 = scmp.eq.s32.totalorder %s28, 5
      %p133 = por %p131, %p132
      %p135 = scmp.ne.s32.totalorder %s120, %s134
      %p136 = scmp.eq.s32.totalorder %s28, 0
      %p137 = por %p135, %p136
      %s139 = sadd.s32 %s138, 1
      %p142 = scmp.eq.s32.totalorder %s22, 5
      %p143 = scmp.ne.s32.totalorder %s138, %s140
      %p144 = scmp.eq.s32.totalorder %s22, 0
      %p145 = por %p143, %p144
      %p146 = scmp.ne.s32.totalorder %s138, %s140
      %p147 = scmp.eq.s32.totalorder %s27, 5
      %p148 = por %p146, %p147
      %p149 = scmp.ne.s32.totalorder %s140, %s141
      %p150 = scmp.eq.s32.totalorder %s27, 0
      %p151 = por %p149, %p150
      %p152 = scmp.ne.s32.totalorder %s140, %s141
      %p153 = scmp.eq.s32.totalorder %s28, 5
      %p154 = por %p152, %p153
      %p156 = scmp.ne.s32.totalorder %s141, %s155
      %p157 = scmp.eq.s32.totalorder %s28, 0
      %p158 = por %p156, %p157
      %s160 = sadd.s32 %s159, 1
      %p163 = scmp.eq.s32.totalorder %s22, 5
      %p164 = scmp.ne.s32.totalorder %s159, %s161
      %p165 = scmp.eq.s32.totalorder %s22, 0
      %p166 = por %p164, %p165
      %p167 = scmp.ne.s32.totalorder %s159, %s161
      %p168 = scmp.eq.s32.totalorder %s27, 5
      %p169 = por %p167, %p168
      %p170 = scmp.ne.s32.totalorder %s161, %s162
      %p171 = scmp.eq.s32.totalorder %s27, 0
      %p172 = por %p170, %p171
      %p173 = scmp.ne.s32.totalorder %s161, %s162
      %p174 = scmp.eq.s32.totalorder %s28, 5
      %p175 = por %p173, %p174
      %p177 = scmp.ne.s32.totalorder %s162, %s176
      %p178 = scmp.eq.s32.totalorder %s28, 0
      %p179 = por %p177, %p178
      %s180 = ssub.s32 %s29, %s41
      %p181 = scmp.eq.s32.totalorder %s180, 0
      %s183 = sadd.s32 %s182, 1
      %s184 = scalar_select %p181, %s182, %s183
      %p187 = pneg %p181
      %p188 = scmp.eq.s32.totalorder %s22, 5
      %p189 = por %p187, %p188
      %p190 = scmp.ne.s32.totalorder %s182, %s185
      %p191 = scmp.eq.s32.totalorder %s22, 0
      %p192 = por %p190, %p191
      %p193 = scmp.ne.s32.totalorder %s182, %s185
      %p194 = scmp.eq.s32.totalorder %s27, 5
      %p195 = por %p193, %p194
      %p196 = scmp.ne.s32.totalorder %s185, %s186
      %p197 = scmp.eq.s32.totalorder %s27, 0
      %p198 = por %p196, %p197
      %p199 = scmp.ne.s32.totalorder %s185, %s186
      %p200 = scmp.eq.s32.totalorder %s28, 5
      %p201 = por %p199, %p200
      %p203 = scmp.ne.s32.totalorder %s186, %s202
      %p204 = scmp.eq.s32.totalorder %s28, 0
      %p205 = por %p203, %p204
      %p206 = scmp.le.s32.totalorder 1, %s22
      %p207 = scmp.lt.s32.totalorder %s22, 7
      %p208 = pnand %p206, %p207
      %p209 = pneg %p208
      // Predicated region
      $region9: #{tpu_custom_call.1} parent=5 // pred_check
        _
      $region10: #{tpu_custom_call.1} parent=5 // pred_check_branch
        %211 = sbr.rel (%p208) target = $region12
      $region11: #{tpu_custom_call.1} parent=5 // pred_region
        %s212 = ssub.s32 %s22, 1
        // Predicated region
        $region13: #{tpu_custom_call.1} parent=11 // pred_check
          %p213 = pneg %p109
        $region14: #{tpu_custom_call.1} parent=11 // pred_check_branch
          %215 = sbr.rel (%p213) target = $region16
        $region15: #{tpu_custom_call.1} parent=11 // pred_region
          %s217 = ssub.s32 1024, 1024
          %218 = vsyncadd [#allocation7], %s217
          %s219 = sshll.u32 [#allocation8], 4
          %s220 = int_to_ptr.vmem [resolvable:$true] %s219
          %225 = dma.hbm_to_vmem [thread:$0]  %s2, 1024, %s220, [#allocation7], 64, 64, 4
        $region16: #{tpu_custom_call.1} parent=11 // pred_fallthru
          _
        // Predicated region
        $region17: #{tpu_custom_call.1} parent=11 // pred_check
          %p226 = pneg %p130
        $region18: #{tpu_custom_call.1} parent=11 // pred_check_branch
          %228 = sbr.rel (%p226) target = $region20
        $region19: #{tpu_custom_call.1} parent=11 // pred_region
          _
        $region20: #{tpu_custom_call.1} parent=11 // pred_fallthru
          _
        // Predicated region
        $region21: #{tpu_custom_call.1} parent=11 // pred_check
          %p229 = pneg %p151
        $region22: #{tpu_custom_call.1} parent=11 // pred_check_branch
          %231 = sbr.rel (%p229) target = $region24
        $region23: #{tpu_custom_call.1} parent=11 // pred_region
          %s233 = ssub.s32 1024, 1024
          %234 = vsyncadd [#allocation10], %s233
          %s235 = sshll.u32 [#allocation9], 4
          %s236 = int_to_ptr.vmem [resolvable:$true] %s235
          %241 = dma.hbm_to_vmem [thread:$0]  %s4, 1024, %s236, [#allocation10], 64, 64, 4
        $region24: #{tpu_custom_call.1} parent=11 // pred_fallthru
          _
        // Predicated region
        $region25: #{tpu_custom_call.1} parent=11 // pred_check
          %p242 = pneg %p172
        $region26: #{tpu_custom_call.1} parent=11 // pred_check_branch
          %244 = sbr.rel (%p242) target = $region28
        $region27: #{tpu_custom_call.1} parent=11 // pred_region
          _
        $region28: #{tpu_custom_call.1} parent=11 // pred_fallthru
          _
      $region12: #{tpu_custom_call.1} parent=5 // pred_fallthru
        _
      %p245 = scmp.lt.s32.totalorder %s22, 6
      // Predicated region
      $region29: #{tpu_custom_call.1} parent=5 // pred_check
        %p246 = pneg %p245
      $region30: #{tpu_custom_call.1} parent=5 // pred_check_branch
        %248 = sbr.rel (%p246) target = $region32
      $region31: #{tpu_custom_call.1} parent=5 // pred_region
        // Predicated region
        $region33: #{tpu_custom_call.1} parent=31 // pred_check
          %p249 = pneg %p54
        $region34: #{tpu_custom_call.1} parent=31 // pred_check_branch
          %251 = sbr.rel (%p249) target = $region36
        $region35: #{tpu_custom_call.1} parent=31 // pred_region
          %s252 = sand.u32 %s44, 1
          %s253 = scalar_lea.sflag [#allocation4], %s252
          %s254 = sand.u32 %s44, 1
          %s255 = smul.addr %s254, 8
          %s256 = scalar_lea.vmem [#allocation3], %s255
          %s258 = ssub.s32 128, 128
          %259 = vsyncadd %s253, %s258
          %s260 = smul.addr %s30, 64
          %s261 = scalar_lea.hbm %s0, %s260
          %s262 = sshll.u32 %s256, 4
          %s263 = int_to_ptr.vmem [resolvable:$true] %s262
          %268 = dma.hbm_to_vmem [thread:$0]  %s261, 128, %s263, %s253, 192, 64, 4
        $region36: #{tpu_custom_call.1} parent=31 // pred_fallthru
          _
        // Predicated region
        $region37: #{tpu_custom_call.1} parent=31 // pred_check
          %p269 = pneg %p82
        $region38: #{tpu_custom_call.1} parent=31 // pred_check_branch
          %271 = sbr.rel (%p269) target = $region40
        $region39: #{tpu_custom_call.1} parent=31 // pred_region
          %s272 = sand.u32 %s22, 1
          %s273 = scalar_lea.sflag [#allocation7], %s272
          %s274 = sand.u32 %s72, 1
          %s275 = smul.addr %s274, 128
          %s276 = scalar_lea.vmem [#allocation6], %s275
          %s277 = smul.u32 16, %s30
          %s279 = ssub.s32 2048, 2048
          %280 = vsyncadd %s273, %s279
          %s281 = smul.addr %s29, 48
          %s282 = sadd.s32 %s277, %s281
          %s283 = smul.addr %s282, 128
          %s284 = scalar_lea.hbm %s1, %s283
          %s285 = sshll.u32 %s276, 4
          %s286 = int_to_ptr.vmem [resolvable:$true] %s285
          %291 = dma.hbm_to_vmem [thread:$0]  %s284, 2048, %s286, %s273, 128, 128, 8
        $region40: #{tpu_custom_call.1} parent=31 // pred_fallthru
          _
      $region32: #{tpu_custom_call.1} parent=5 // pred_fallthru
        _
      %p292 = scmp.le.s32.totalorder 1, %s22
      %p293 = scmp.lt.s32.totalorder %s22, 7
      %p294 = pnand %p292, %p293
      %p295 = pneg %p294
      // Predicated region
      $region41: #{tpu_custom_call.1} parent=5 // pred_check
        _
      $region42: #{tpu_custom_call.1} parent=5 // pred_check_branch
        %297 = sbr.rel (%p294) target = $region44
      $region43: #{tpu_custom_call.1} parent=5 // pred_region
        %s298 = ssub.s32 %s22, 1
        %s299 = sand.u32 %s47, 1
        %s300 = scalar_lea.sflag [#allocation4], %s299
        %s301 = sand.u32 %s47, 1
        %s302 = smul.addr %s301, 8
        %s303 = scalar_lea.vmem [#allocation3], %s302
        // Predicated region
        $region45: #{tpu_custom_call.1} parent=43 // pred_check
          %p304 = pneg %p60
        $region46: #{tpu_custom_call.1} parent=43 // pred_check_branch
          %306 = sbr.rel (%p304) target = $region48
        $region47: #{tpu_custom_call.1} parent=43 // pred_region
          %307 = dma.done %s300, 128
        $region48: #{tpu_custom_call.1} parent=43 // pred_fallthru
          _
        %s308 = sand.u32 %s27, 1
        %s309 = scalar_lea.sflag [#allocation7], %s308
        %s310 = sand.u32 %s75, 1
        %s311 = smul.addr %s310, 128
        %s312 = scalar_lea.vmem [#allocation6], %s311
        // Predicated region
        $region49: #{tpu_custom_call.1} parent=43 // pred_check
          %p313 = pneg %p88
        $region50: #{tpu_custom_call.1} parent=43 // pred_check_branch
          %315 = sbr.rel (%p313) target = $region52
        $region51: #{tpu_custom_call.1} parent=43 // pred_region
          %316 = dma.done %s309, 2048
        $region52: #{tpu_custom_call.1} parent=43 // pred_fallthru
          _
        // Predicated region
        $region53: #{tpu_custom_call.1} parent=43 // pred_check
          %p317 = pneg %p109
        $region54: #{tpu_custom_call.1} parent=43 // pred_check_branch
          %319 = sbr.rel (%p317) target = $region56
        $region55: #{tpu_custom_call.1} parent=43 // pred_region
          %320 = dma.done [#allocation7], 1024
        $region56: #{tpu_custom_call.1} parent=43 // pred_fallthru
          _
        // Predicated region
        $region57: #{tpu_custom_call.1} parent=43 // pred_check
          %p321 = pneg %p151
        $region58: #{tpu_custom_call.1} parent=43 // pred_check_branch
          %323 = sbr.rel (%p321) target = $region60
        $region59: #{tpu_custom_call.1} parent=43 // pred_region
          %324 = dma.done [#allocation10], 1024
        $region60: #{tpu_custom_call.1} parent=43 // pred_fallthru
          _
        %s325 = sand.u32 %s47, 1
        %s326 = scalar_lea.sflag [#allocation4], %s325
        %s327 = sand.u32 %s47, 1
        %s328 = smul.addr %s327, 8
        %s329 = scalar_lea.vmem [#allocation3], %s328
        %p330 = pneg %p60
        %p331 = pneg %p57
        %s332 = sand.u32 %s27, 1
        %s333 = scalar_lea.sflag [#allocation7], %s332
        %s334 = sand.u32 %s75, 1
        %s335 = smul.addr %s334, 128
        %s336 = scalar_lea.vmem [#allocation6], %s335
        %p337 = pneg %p88
        %p338 = pneg %p85
        %p339 = pneg %p109
        %p340 = pneg %p106
        %p341 = pneg %p130
        %p342 = pneg %p127
        %p343 = pneg %p151
        %p344 = pneg %p148
        %p345 = pneg %p172
        %p346 = pneg %p169
        %p347 = pneg %p198
        %p348 = pneg %p195
        %s349 = sand.u32 %s185, 1
        %s350 = scalar_lea.sflag [#allocation5], %s349
        %s351 = sand.u32 %s185, 1
        %s352 = smul.addr %s351, 16
        %s353 = scalar_lea.vmem [#allocation11], %s352
        %s354 = smul.u32 16, %s32
        %p356 = scmp.eq.s32.totalorder %s32, 0
        // Predicated region
        $region61: #{tpu_custom_call.1} parent=43 // pred_check
          %p357 = pneg %p356
        $region62: #{tpu_custom_call.1} parent=43 // pred_check_branch
          %359 = sbr.rel (%p357) target = $region64
        $region63: #{tpu_custom_call.1} parent=43 // pred_region
          %360 = vst [vmem:[#allocation2] sm:$0xff] 0.0
          %361 = vst [vmem:[#allocation2 + $0x8] sm:$0xff] 0.0
        $region64: #{tpu_custom_call.1} parent=43 // pred_fallthru
          _
        %v362 = vld [vmem:[%s303] sm:$0xf]
        %v363 = vld [vmem:[%s303 + $0x4] sm:$0xf]
        %v364 = vld [vmem:[%s312] sm:$0xff]
        %v365 = vld [vmem:[%s312 + $0x8] sm:$0xff]
        %v366 = vld [vmem:[%s312 + $0x10] sm:$0xff]
        %v367 = vld [vmem:[%s312 + $0x18] sm:$0xff]
        %v368 = vld [vmem:[%s312 + $0x20] sm:$0xff]
        %v369 = vld [vmem:[%s312 + $0x28] sm:$0xff]
        %v370 = vld [vmem:[%s312 + $0x30] sm:$0xff]
        %v371 = vld [vmem:[%s312 + $0x38] sm:$0xff]
        %v372 = vld [vmem:[%s312 + $0x40] sm:$0xff]
        %v373 = vld [vmem:[%s312 + $0x48] sm:$0xff]
        %v374 = vld [vmem:[%s312 + $0x50] sm:$0xff]
        %v375 = vld [vmem:[%s312 + $0x58] sm:$0xff]
        %v376 = vld [vmem:[%s312 + $0x60] sm:$0xff]
        %v377 = vld [vmem:[%s312 + $0x68] sm:$0xff]
        %v378 = vld [vmem:[%s312 + $0x70] sm:$0xff]
        %v379 = vld [vmem:[%s312 + $0x78] sm:$0xff]
        %v380 = vpack.c.bf16 %v365, %v364
        %v381 = vpack.c.bf16 %v367, %v366
        %v382 = vpack.c.bf16 %v369, %v368
        %v383 = vpack.c.bf16 %v371, %v370
        %v384 = vpack.c.bf16 %v373, %v372
        %v385 = vpack.c.bf16 %v375, %v374
        %v386 = vpack.c.bf16 %v377, %v376
        %v387 = vpack.c.bf16 %v379, %v378
        %v388 = vld [vmem:[#allocation2] sm:$0xff]
        %v389 = vld [vmem:[#allocation2 + $0x8] sm:$0xff]
        %v392 = vunpack.c.l.b16 %v362
        %v393 = vunpack.c.l.b16 %v363
        %v394 = vpack.c.b16 %v393, %v392
        %396 = vmatprep.subr.bf16.mxu0 0
        %397 = vmatpush1.bf16.msra.mxu0 %v380
        %398 = vmatprep.subr.bf16.mxu0 0
        %399 = vmatpush1.bf16.msra.mxu0 %v381
        %400 = vmatprep.subr.bf16.mxu0 0
        %401 = vmatpush1.bf16.msra.mxu0 %v382
        %402 = vmatprep.subr.bf16.mxu0 0
        %403 = vmatpush1.bf16.msra.mxu0 %v383
        %404 = vmatprep.subr.bf16.mxu0 0
        %405 = vmatpush1.bf16.msra.mxu0 %v384
        %406 = vmatprep.subr.bf16.mxu0 0
        %407 = vmatpush1.bf16.msra.mxu0 %v385
        %408 = vmatprep.subr.bf16.mxu0 0
        %409 = vmatpush1.bf16.msra.mxu0 %v386
        %410 = vmatprep.subr.bf16.mxu0 0
        %411 = vmatpush1.bf16.msra.mxu0 %v387
        %412 = vmatprep.subr.bf16.mxu0 0
        %413 = vmatpush1.bf16.msra.mxu0 0
        %414 = vmatprep.subr.bf16.mxu0 0
        %415 = vmatpush1.bf16.msra.mxu0 0
        %416 = vmatprep.subr.bf16.mxu0 0
        %417 = vmatpush1.bf16.msra.mxu0 0
        %418 = vmatprep.subr.bf16.mxu0 0
        %419 = vmatpush1.bf16.msra.mxu0 0
        %420 = vmatprep.subr.bf16.mxu0 0
        %421 = vmatpush1.bf16.msra.mxu0 0
        %422 = vmatprep.subr.bf16.mxu0 0
        %423 = vmatpush1.bf16.msra.mxu0 0
        %424 = vmatprep.subr.bf16.mxu0 0
        %425 = vmatpush1.bf16.msra.mxu0 0
        %426 = vmatprep.subr.bf16.mxu0 0
        %427 = vmatpush1.bf16.msra.mxu0 0
        %428 = vmatprep.mubr.bf16.mxu0 0
        %429 = vmatmul.mubr.bf16.gmra.mrb[0].mxu0 %v394
        %v430 = vpop.f32.mrb[0].mxu0
        %v431 = vadd.f32 0.0, %v430
        %v432 = vpop.f32.mrb[0].mxu0
        %v433 = vpop.f32.mrb[0].mxu0
        %v434 = vadd.f32 0.0, %v433
        %v435 = vpop.f32.mrb[0].mxu0
        %436 = vdwg.mxu0
        %v437 = vadd.f32 %v388, %v431
        %v438 = vadd.f32 %v389, %v434
        %439 = vst [vmem:[#allocation2] sm:$0xff] %v437
        %440 = vst [vmem:[#allocation2 + $0x8] sm:$0xff] %v438
        %p441 = scmp.eq.s32.totalorder %s32, 2
        // Predicated region
        $region65: #{tpu_custom_call.1} parent=43 // pred_check
          %p442 = pneg %p441
        $region66: #{tpu_custom_call.1} parent=43 // pred_check_branch
          %444 = sbr.rel (%p442) target = $region68
        $region67: #{tpu_custom_call.1} parent=43 // pred_region
          %v445 = vld [vmem:[#allocation2] sm:$0xff]
          %v446 = vld [vmem:[#allocation2 + $0x8] sm:$0xff]
          %v447 = vpack.c.bf16 %v446, %v445
          %v448 = vld [vmem:[#allocation8] sm:$0xf]
          %v449 = vld [vmem:[#allocation8 + $0x4] sm:$0xf]
          %v450 = vld [vmem:[#allocation8 + $0x8] sm:$0xf]
          %v451 = vld [vmem:[#allocation8 + $0xc] sm:$0xf]
          %v452 = vld [vmem:[#allocation8 + $0x10] sm:$0xf]
          %v453 = vld [vmem:[#allocation8 + $0x14] sm:$0xf]
          %v454 = vld [vmem:[#allocation8 + $0x18] sm:$0xf]
          %v455 = vld [vmem:[#allocation8 + $0x1c] sm:$0xf]
          %v456 = vld [vmem:[#allocation8 + $0x20] sm:$0xf]
          %v457 = vld [vmem:[#allocation8 + $0x24] sm:$0xf]
          %v458 = vld [vmem:[#allocation8 + $0x28] sm:$0xf]
          %v459 = vld [vmem:[#allocation8 + $0x2c] sm:$0xf]
          %v460 = vld [vmem:[#allocation8 + $0x30] sm:$0xf]
          %v461 = vld [vmem:[#allocation8 + $0x34] sm:$0xf]
          %v462 = vld [vmem:[#allocation8 + $0x38] sm:$0xf]
          %v463 = vld [vmem:[#allocation8 + $0x3c] sm:$0xf]
          %v464 = vld [vmem:[%s3] sm:$0x1]
          %v466 = vlaneseq
          %v467 = vshrl.u32 %v466, 7
          %v468 = vsub.s32 0, %v467
          %v469 = vrot.slane %v464, %v468
          %v487 = vunpack.c.l.b16 %v448
          %v488 = vunpack.c.l.b16 %v449
          %v489 = vunpack.c.l.b16 %v450
          %v490 = vunpack.c.l.b16 %v451
          %v491 = vunpack.c.l.b16 %v452
          %v492 = vunpack.c.l.b16 %v453
          %v493 = vunpack.c.l.b16 %v454
          %v494 = vunpack.c.l.b16 %v455
          %v495 = vunpack.c.l.b16 %v456
          %v496 = vunpack.c.l.b16 %v457
          %v497 = vunpack.c.l.b16 %v458
          %v498 = vunpack.c.l.b16 %v459
          %v499 = vunpack.c.l.b16 %v460
          %v500 = vunpack.c.l.b16 %v461
          %v501 = vunpack.c.l.b16 %v462
          %v502 = vunpack.c.l.b16 %v463
          %v503 = vpack.c.b16 %v488, %v487
          %v504 = vpack.c.b16 %v490, %v489
          %v505 = vpack.c.b16 %v492, %v491
          %v506 = vpack.c.b16 %v494, %v493
          %v507 = vpack.c.b16 %v496, %v495
          %v508 = vpack.c.b16 %v498, %v497
          %v509 = vpack.c.b16 %v500, %v499
          %v510 = vpack.c.b16 %v502, %v501
          %519 = vmatprep.subr.bf16.mxu0 0
          %520 = vmatpush1.bf16.msra.mxu0 %v503
          %521 = vmatprep.subr.bf16.mxu0 0
          %522 = vmatpush1.bf16.msra.mxu0 %v504
          %523 = vmatprep.subr.bf16.mxu0 0
          %524 = vmatpush1.bf16.msra.mxu0 %v505
          %525 = vmatprep.subr.bf16.mxu0 0
          %526 = vmatpush1.bf16.msra.mxu0 %v506
          %527 = vmatprep.subr.bf16.mxu0 0
          %528 = vmatpush1.bf16.msra.mxu0 %v507
          %529 = vmatprep.subr.bf16.mxu0 0
          %530 = vmatpush1.bf16.msra.mxu0 %v508
          %531 = vmatprep.subr.bf16.mxu0 0
          %532 = vmatpush1.bf16.msra.mxu0 %v509
          %533 = vmatprep.subr.bf16.mxu0 0
          %534 = vmatpush1.bf16.msra.mxu0 %v510
          %535 = vmatprep.subr.bf16.mxu0 0
          %536 = vmatpush1.bf16.msra.mxu0 0
          %537 = vmatprep.subr.bf16.mxu0 0
          %538 = vmatpush1.bf16.msra.mxu0 0
          %539 = vmatprep.subr.bf16.mxu0 0
          %540 = vmatpush1.bf16.msra.mxu0 0
          %541 = vmatprep.subr.bf16.mxu0 0
          %542 = vmatpush1.bf16.msra.mxu0 0
          %543 = vmatprep.subr.bf16.mxu0 0
          %544 = vmatpush1.bf16.msra.mxu0 0
          %545 = vmatprep.subr.bf16.mxu0 0
          %546 = vmatpush1.bf16.msra.mxu0 0
          %547 = vmatprep.subr.bf16.mxu0 0
          %548 = vmatpush1.bf16.msra.mxu0 0
          %549 = vmatprep.subr.bf16.mxu0 0
          %550 = vmatpush1.bf16.msra.mxu0 0
          %551 = vmatprep.mubr.bf16.mxu0 0
          %552 = vmatmul.mubr.bf16.gmra.mrb[0].mxu0 %v447
          %v553 = vpop.f32.mrb[0].mxu0
          %v554 = vadd.f32 %v469, %v553
          %v555 = vpop.f32.mrb[0].mxu0
          %v556 = vpop.f32.mrb[0].mxu0
          %v557 = vadd.f32 %v469, %v556
          %v558 = vpop.f32.mrb[0].mxu0
          %559 = vdwg.mxu0
          %v560 = vmax.f32 %v554, 0.0
          %v561 = vmax.f32 %v557, 0.0
          %v562 = vpack.c.bf16 %v561, %v560
          %v563 = vld [vmem:[#allocation9] sm:$0xf]
          %v564 = vld [vmem:[#allocation9 + $0x4] sm:$0xf]
          %v565 = vld [vmem:[#allocation9 + $0x8] sm:$0xf]
          %v566 = vld [vmem:[#allocation9 + $0xc] sm:$0xf]
          %v567 = vld [vmem:[#allocation9 + $0x10] sm:$0xf]
          %v568 = vld [vmem:[#allocation9 + $0x14] sm:$0xf]
          %v569 = vld [vmem:[#allocation9 + $0x18] sm:$0xf]
          %v570 = vld [vmem:[#allocation9 + $0x1c] sm:$0xf]
          %v571 = vld [vmem:[#allocation9 + $0x20] sm:$0xf]
          %v572 = vld [vmem:[#allocation9 + $0x24] sm:$0xf]
          %v573 = vld [vmem:[#allocation9 + $0x28] sm:$0xf]
          %v574 = vld [vmem:[#allocation9 + $0x2c] sm:$0xf]
          %v575 = vld [vmem:[#allocation9 + $0x30] sm:$0xf]
          %v576 = vld [vmem:[#allocation9 + $0x34] sm:$0xf]
          %v577 = vld [vmem:[#allocation9 + $0x38] sm:$0xf]
          %v578 = vld [vmem:[#allocation9 + $0x3c] sm:$0xf]
          %v579 = vld [vmem:[%s5] sm:$0x1]
          %v581 = vlaneseq
          %v582 = vshrl.u32 %v581, 7
          %v583 = vsub.s32 0, %v582
          %v584 = vrot.slane %v579, %v583
          %v602 = vunpack.c.l.b16 %v563
          %v603 = vunpack.c.l.b16 %v564
          %v604 = vunpack.c.l.b16 %v565
          %v605 = vunpack.c.l.b16 %v566
          %v606 = vunpack.c.l.b16 %v567
          %v607 = vunpack.c.l.b16 %v568
          %v608 = vunpack.c.l.b16 %v569
          %v609 = vunpack.c.l.b16 %v570
          %v610 = vunpack.c.l.b16 %v571
          %v611 = vunpack.c.l.b16 %v572
          %v612 = vunpack.c.l.b16 %v573
          %v613 = vunpack.c.l.b16 %v574
          %v614 = vunpack.c.l.b16 %v575
          %v615 = vunpack.c.l.b16 %v576
          %v616 = vunpack.c.l.b16 %v577
          %v617 = vunpack.c.l.b16 %v578
          %v618 = vpack.c.b16 %v603, %v602
          %v619 = vpack.c.b16 %v605, %v604
          %v620 = vpack.c.b16 %v607, %v606
          %v621 = vpack.c.b16 %v609, %v608
          %v622 = vpack.c.b16 %v611, %v610
          %v623 = vpack.c.b16 %v613, %v612
          %v624 = vpack.c.b16 %v615, %v614
          %v625 = vpack.c.b16 %v617, %v616
          %634 = vmatprep.subr.bf16.mxu0 0
          %635 = vmatpush1.bf16.msra.mxu0 %v618
          %636 = vmatprep.subr.bf16.mxu0 0
          %637 = vmatpush1.bf16.msra.mxu0 %v619
          %638 = vmatprep.subr.bf16.mxu0 0
          %639 = vmatpush1.bf16.msra.mxu0 %v620
          %640 = vmatprep.subr.bf16.mxu0 0
          %641 = vmatpush1.bf16.msra.mxu0 %v621
          %642 = vmatprep.subr.bf16.mxu0 0
          %643 = vmatpush1.bf16.msra.mxu0 %v622
          %644 = vmatprep.subr.bf16.mxu0 0
          %645 = vmatpush1.bf16.msra.mxu0 %v623
          %646 = vmatprep.subr.bf16.mxu0 0
          %647 = vmatpush1.bf16.msra.mxu0 %v624
          %648 = vmatprep.subr.bf16.mxu0 0
          %649 = vmatpush1.bf16.msra.mxu0 %v625
          %650 = vmatprep.subr.bf16.mxu0 0
          %651 = vmatpush1.bf16.msra.mxu0 0
          %652 = vmatprep.subr.bf16.mxu0 0
          %653 = vmatpush1.bf16.msra.mxu0 0
          %654 = vmatprep.subr.bf16.mxu0 0
          %655 = vmatpush1.bf16.msra.mxu0 0
          %656 = vmatprep.subr.bf16.mxu0 0
          %657 = vmatpush1.bf16.msra.mxu0 0
          %658 = vmatprep.subr.bf16.mxu0 0
          %659 = vmatpush1.bf16.msra.mxu0 0
          %660 = vmatprep.subr.bf16.mxu0 0
          %661 = vmatpush1.bf16.msra.mxu0 0
          %662 = vmatprep.subr.bf16.mxu0 0
          %663 = vmatpush1.bf16.msra.mxu0 0
          %664 = vmatprep.subr.bf16.mxu0 0
          %665 = vmatpush1.bf16.msra.mxu0 0
          %666 = vmatprep.mubr.bf16.mxu0 0
          %667 = vmatmul.mubr.bf16.gmra.mrb[0].mxu0 %v562
          %v668 = vpop.f32.mrb[0].mxu0
          %v669 = vadd.f32 %v584, %v668
          %v670 = vpop.f32.mrb[0].mxu0
          %v671 = vpop.f32.mrb[0].mxu0
          %v672 = vadd.f32 %v584, %v671
          %v673 = vpop.f32.mrb[0].mxu0
          %674 = vdwg.mxu0
          %675 = vst [vmem:[%s353] sm:$0xff] %v669
          %676 = vst [vmem:[%s353 + $0x8] sm:$0xff] %v672
        $region68: #{tpu_custom_call.1} parent=43 // pred_fallthru
          _
        %s677 = sand.u32 %s185, 1
        %s678 = scalar_lea.sflag [#allocation5], %s677
        %s679 = sand.u32 %s185, 1
        %s680 = smul.addr %s679, 16
        %s681 = scalar_lea.vmem [#allocation11], %s680
        // Predicated region
        $region69: #{tpu_custom_call.1} parent=43 // pred_check
          %p682 = pneg %p195
        $region70: #{tpu_custom_call.1} parent=43 // pred_check_branch
          %684 = sbr.rel (%p682) target = $region72
        $region71: #{tpu_custom_call.1} parent=43 // pred_region
          %s686 = ssub.s32 256, 256
          %687 = vsyncadd %s678, %s686
          %s688 = smul.addr %s31, 2
          %s689 = smul.addr %s688, 128
          %s690 = scalar_lea.hbm %s6, %s689
          %s691 = sshll.u32 %s681, 4
          %s692 = int_to_ptr.vmem [resolvable:$true] %s691
          %697 = dma.vmem_to_hbm [thread:$0]  %s692, 256, %s690, %s678, 128, 128, 8
        $region72: #{tpu_custom_call.1} parent=43 // pred_fallthru
          _
      $region44: #{tpu_custom_call.1} parent=5 // pred_fallthru
        _
      %p698 = scmp.le.s32.totalorder 2, %s22
      // Predicated region
      $region73: #{tpu_custom_call.1} parent=5 // pred_check
        %p699 = pneg %p698
      $region74: #{tpu_custom_call.1} parent=5 // pred_check_branch
        %701 = sbr.rel (%p699) target = $region76
      $region75: #{tpu_custom_call.1} parent=5 // pred_region
        %s702 = ssub.s32 %s22, 2
        // Predicated region
        $region77: #{tpu_custom_call.1} parent=75 // pred_check
          %p703 = pneg %p201
        $region78: #{tpu_custom_call.1} parent=75 // pred_check_branch
          %705 = sbr.rel (%p703) target = $region80
        $region79: #{tpu_custom_call.1} parent=75 // pred_region
          %s706 = sand.u32 %s186, 1
          %s707 = scalar_lea.sflag [#allocation5], %s706
          %s708 = sand.u32 %s186, 1
          %s709 = smul.addr %s708, 16
          %s710 = scalar_lea.vmem [#allocation11], %s709
          %711 = dma.done %s707, 256
        $region80: #{tpu_custom_call.1} parent=75 // pred_fallthru
          _
      $region76: #{tpu_custom_call.1} parent=5 // pred_fallthru
        _
    $region6: #{tpu_custom_call.1} parent=1 // loop_footer
      %s26 = sadd.s32 1, %s22
    $region7: #{tpu_custom_call.1} parent=1 // loop_footer_branch
      %21 = sbr.rel target = $region3
    $region8: #{tpu_custom_call.1} parent=1 // loop_exit
      _
    %712 = vsyncpa [#allocation4], 1
    %s713 = scalar_lea.sflag [#allocation4], 1
    %714 = vsyncpa %s713, 1
    %715 = vsyncpa [#allocation7], 1
    %s716 = scalar_lea.sflag [#allocation7], 1
    %717 = vsyncpa %s716, 1
    %718 = vsyncpa [#allocation10], 1
    %719 = vsyncpa [#allocation5], 1
    %s720 = scalar_lea.sflag [#allocation5], 1
    %721 = vsyncpa %s720, 1

</llo_original>
